<compile_context>
chip_gen: v7x
topology: tpu7x:2x2x1
jax: 0.10.0
libtpu: 0.0.40
codegen_flags: <defaults>
</compile_context>

<pallas_src>
import numpy as np
import jax
import jax.numpy as jnp
from jax.experimental import pallas as pl
from jax.experimental.pallas import tpu as pltpu


def _reflect(x, minx, maxx):
    """Identical to the numpy reflect() in the PyTorch module."""
    rng = maxx - minx
    double_rng = 2 * rng
    mod = np.fmod(x - minx, double_rng)
    normed_mod = np.where(mod < 0, mod + double_rng, mod)
    out = np.where(normed_mod >= rng, double_rng - normed_mod, normed_mod) + minx
    return np.array(out, dtype=x.dtype)


def _contiguous_runs(idx):
    """Decompose a static 1-D index array into maximal runs of consecutive (+1)
    source indices. Returns a tuple of (out_start, in_start, length)."""
    runs = []
    start = 0
    n = len(idx)
    for i in range(1, n + 1):
        if i == n or int(idx[i]) != int(idx[i - 1]) + 1:
            runs.append((start, int(idx[start]), i - start))
            start = i
    return tuple(runs)


def _padded_vmem_bytes(rows, cols, itemsize):
    """Real VMEM bytes of one (rows, cols) plane: last two dims tile to
    (8 * packing, 128) — 8 sublanes for 32-bit, 16 for bf16, 32 for int8."""
    sub = 8 * max(1, 4 // itemsize)
    prows = -(-rows // sub) * sub
    pcols = -(-cols // 128) * 128
    return prows * pcols * itemsize


def _vmem_capacity_bytes():
    try:
        return int(pltpu.get_tpu_info().vmem_capacity_bytes)
    except Exception:
        return 64 << 20  # conservative fallback: v7x per-TensorCore VMEM


def _choose_block_b(B, per_b_padded_bytes):
    """Pick the collapsed-batch block size.

    Priorities:
      1. 2 * block_b * per_b_padded_bytes (double-buffered in + out blocks)
         stays well inside the scoped VMEM budget of the current generation.
      2. >= 2 grid steps when B >= 2 (v7x megacore), ~8 steps for pipelining.
      3. Blocks >= ~512 KiB padded so the ~0.35 us per-step overhead is noise.
      4. block_b divides B when a divisor is within a factor of 2.
    """
    budget = _vmem_capacity_bytes() // 8          # 8-16 MiB across generations
    max_by_vmem = max(1, budget // (2 * per_b_padded_bytes))

    cap = max(1, min(B, max_by_vmem))
    if B >= 2:                                    # at least 2 'parallel' steps
        cap = min(cap, -(-B // 2))

    desired = -(-B // 8)                          # aim for ~8 pipelined steps
    min_b_for_overhead = max(1, (512 << 10) // per_b_padded_bytes)
    desired = max(desired, min_b_for_overhead)    # ...but keep blocks sizeable
    block_b = max(1, min(cap, desired))

    # Nudge onto a divisor of B if one exists within a factor of 2.
    for d in range(block_b, max(0, block_b // 2), -1):
        if B % d == 0:
            return d
    return block_b


def _make_pad_kernel(row_runs, col_pairs, left, W):
    """Kernel = static row-band copies + per-pad-column strip copies.

    row_runs : (out_row, in_row, length) runs covering every output row.
    col_pairs: (out_col, src_out_col) for every padded output column, where
               src_out_col lies in the interior span [left, left + W) of the
               output block (already filled by the row-band copies).
    """
    def kernel(x_ref, o_ref):
        # (1) Full-input-width row bands into the interior column span.
        for (ro, ri, rl) in row_runs:
            o_ref[:, ro:ro + rl, left:left + W] = x_ref[:, ri:ri + rl, :]
        # (2) Padded columns: thin strips copied from the already-filled
        #     interior columns of the output block itself (covers corners too).
        for (jo, js) in col_pairs:
            o_ref[:, :, jo:jo + 1] = o_ref[:, :, js:js + 1]
    return kernel


def symmetric_padding_2d(im: jax.Array, padding=(1, 1, 1, 1)) -> jax.Array:
    """Pallas equivalent of SymmetricPadding2D.forward for a 4-D NCHW tensor."""
    N, C, H, W = im.shape
    left, right, top, bottom = padding

    # Static index computation (exactly as in the PyTorch module).
    x_idx = np.arange(-left, W + right)
    y_idx = np.arange(-top, H + bottom)
    x_pad = _reflect(x_idx, -0.5, W - 0.5)
    y_pad = _reflect(y_idx, -0.5, H - 0.5)
    H_out, W_out = len(y_pad), len(x_pad)

    # Static decomposition of the gather:
    #   rows    -> maximal contiguous runs (the interior is a single run of H)
    #   columns -> one (dst, src-in-output) pair per padded column.
    row_runs = _contiguous_runs(y_pad)
    col_pairs = tuple(
        (int(j), int(left + x_pad[j]))
        for j in range(W_out)
        if j < left or j >= left + W
    )

    # Collapse batch and channels into one leading axis.
    B = N * C
    x3 = im.reshape(B, H, W)

    itemsize = jnp.dtype(im.dtype).itemsize
    per_b_padded = (_padded_vmem_bytes(H, W, itemsize)
                    + _padded_vmem_bytes(H_out, W_out, itemsize))
    block_b = _choose_block_b(B, per_b_padded)
    grid = (pl.cdiv(B, block_b),)

    # Explicit scoped-VMEM limit with headroom over the double-buffered blocks.
    vmem_limit = int(min(_vmem_capacity_bytes() // 2,
                         max(16 << 20, 2 * block_b * per_b_padded + (2 << 20))))

    # Memory-bound custom call: zero flops, one HBM read + one HBM write.
    cost = pl.CostEstimate(
        flops=0,
        transcendentals=0,
        bytes_accessed=(B * H * W + B * H_out * W_out) * itemsize,
    )

    # TODO(synk): for large N*C with tiny H,W, a batch-last (lane-dense) layout
    # would remove the W/128 lane masking and ~8x VMEM inflation, but it only
    # pays off if the surrounding ops are already channels-last; keep NCHW.

    out3 = pl.pallas_call(
        _make_pad_kernel(row_runs, col_pairs, left, W),
        out_shape=jax.ShapeDtypeStruct((B, H_out, W_out), im.dtype),
        grid=grid,
        in_specs=[pl.BlockSpec((block_b, H, W), lambda b: (b, 0, 0))],
        out_specs=pl.BlockSpec((block_b, H_out, W_out), lambda b: (b, 0, 0)),
        compiler_params=pltpu.CompilerParams(
            dimension_semantics=("parallel",),
            vmem_limit_bytes=vmem_limit,
        ),
        cost_estimate=cost,
    )(x3)

    return out3.reshape(N, C, H_out, W_out)


def _numpy_reference(im_np, padding):
    h, w = im_np.shape[-2:]
    left, right, top, bottom = padding
    x_idx = np.arange(-left, w + right)
    y_idx = np.arange(-top, h + bottom)
    x_pad = _reflect(x_idx, -0.5, w - 0.5)
    y_pad = _reflect(y_idx, -0.5, h - 0.5)
    xx, yy = np.meshgrid(x_pad, y_pad)
    return im_np[..., yy, xx]


if __name__ == "__main__":
    key = jax.random.PRNGKey(0)
    N, C, H, W = 2, 4, 16, 16
    x = jax.random.normal(key, (N, C, H, W), dtype=jnp.float32)

    # Primary check (module default padding).
    padding = (1, 1, 1, 1)  # (left, right, top, bottom)
    out = symmetric_padding_2d(x, padding)
    out = jax.block_until_ready(out)
    ref = _numpy_reference(np.asarray(x), padding)
    assert out.shape == ref.shape, (out.shape, ref.shape)
    np.testing.assert_allclose(np.asarray(out), ref, rtol=0, atol=0)

    # Secondary check: padding > 1 exercises the unit-run / multi-column path.
    padding2 = (2, 2, 2, 2)
    out2 = jax.block_until_ready(symmetric_padding_2d(x, padding2))
    ref2 = _numpy_reference(np.asarray(x), padding2)
    np.testing.assert_allclose(np.asarray(out2), ref2, rtol=0, atol=0)

    print("KERNEL_OK")
</pallas_src>

<mosaic_0001>
module attributes {stable_mosaic.version = 11 : i64} {
  func.func @kernel(%arg0: i32, %arg1: memref<4x16x16xf32, #tpu.memory_space<vmem>>, %arg2: memref<4x18x18xf32, #tpu.memory_space<vmem>>) attributes {dimension_semantics = [#tpu.dimension_semantics<parallel>], iteration_bounds = array<i64: 2>, scalar_prefetch = 0 : i64, scratch_operands = 0 : i64, tpu.core_type = #tpu.core_type<tc>, window_params = [{transform_indices = @transform_0, window_bounds = array<i64: 4, 16, 16>}, {transform_indices = @transform_1, window_bounds = array<i64: 4, 18, 18>}]} {
    %c0 = arith.constant 0 : index
    %c0_0 = arith.constant 0 : index
    %c0_1 = arith.constant 0 : index
    %0 = vector.load %arg1[%c0, %c0_0, %c0_1] : memref<4x16x16xf32, #tpu.memory_space<vmem>>, vector<4x1x16xf32>
    %c0_2 = arith.constant 0 : index
    %c0_3 = arith.constant 0 : index
    %c1 = arith.constant 1 : index
    %1 = vector.load %arg2[%c0_2, %c0_3, %c1] : memref<4x18x18xf32, #tpu.memory_space<vmem>>, vector<4x1x16xf32>
    tpu.vector_store %arg2[%c0_2, %c0_3, %c1], %0 {strides = array<i32>} : memref<4x18x18xf32, #tpu.memory_space<vmem>>, vector<4x1x16xf32>,
    %c0_4 = arith.constant 0 : index
    %c0_5 = arith.constant 0 : index
    %c0_6 = arith.constant 0 : index
    %2 = vector.load %arg1[%c0_4, %c0_5, %c0_6] : memref<4x16x16xf32, #tpu.memory_space<vmem>>, vector<4x16x16xf32>
    %c0_7 = arith.constant 0 : index
    %c1_8 = arith.constant 1 : index
    %c1_9 = arith.constant 1 : index
    %3 = vector.load %arg2[%c0_7, %c1_8, %c1_9] : memref<4x18x18xf32, #tpu.memory_space<vmem>>, vector<4x16x16xf32>
    tpu.vector_store %arg2[%c0_7, %c1_8, %c1_9], %2 {strides = array<i32>} : memref<4x18x18xf32, #tpu.memory_space<vmem>>, vector<4x16x16xf32>,
    %c0_10 = arith.constant 0 : index
    %c15 = arith.constant 15 : index
    %c0_11 = arith.constant 0 : index
    %4 = vector.load %arg1[%c0_10, %c15, %c0_11] : memref<4x16x16xf32, #tpu.memory_space<vmem>>, vector<4x1x16xf32>
    %c0_12 = arith.constant 0 : index
    %c17 = arith.constant 17 : index
    %c1_13 = arith.constant 1 : index
    %5 = vector.load %arg2[%c0_12, %c17, %c1_13] : memref<4x18x18xf32, #tpu.memory_space<vmem>>, vector<4x1x16xf32>
    tpu.vector_store %arg2[%c0_12, %c17, %c1_13], %4 {strides = array<i32>} : memref<4x18x18xf32, #tpu.memory_space<vmem>>, vector<4x1x16xf32>,
    %c0_14 = arith.constant 0 : index
    %c0_15 = arith.constant 0 : index
    %c1_16 = arith.constant 1 : index
    %6 = vector.load %arg2[%c0_14, %c0_15, %c1_16] : memref<4x18x18xf32, #tpu.memory_space<vmem>>, vector<4x18x1xf32>
    %c0_17 = arith.constant 0 : index
    %c0_18 = arith.constant 0 : index
    %c0_19 = arith.constant 0 : index
    %7 = vector.load %arg2[%c0_17, %c0_18, %c0_19] : memref<4x18x18xf32, #tpu.memory_space<vmem>>, vector<4x18x1xf32>
    tpu.vector_store %arg2[%c0_17, %c0_18, %c0_19], %6 {strides = array<i32>} : memref<4x18x18xf32, #tpu.memory_space<vmem>>, vector<4x18x1xf32>,
    %c0_20 = arith.constant 0 : index
    %c0_21 = arith.constant 0 : index
    %c16 = arith.constant 16 : index
    %8 = vector.load %arg2[%c0_20, %c0_21, %c16] : memref<4x18x18xf32, #tpu.memory_space<vmem>>, vector<4x18x1xf32>
    %c0_22 = arith.constant 0 : index
    %c0_23 = arith.constant 0 : index
    %c17_24 = arith.constant 17 : index
    %9 = vector.load %arg2[%c0_22, %c0_23, %c17_24] : memref<4x18x18xf32, #tpu.memory_space<vmem>>, vector<4x18x1xf32>
    tpu.vector_store %arg2[%c0_22, %c0_23, %c17_24], %8 {strides = array<i32>} : memref<4x18x18xf32, #tpu.memory_space<vmem>>, vector<4x18x1xf32>,
    return
  }
  func.func @transform_0(%arg0: i32) -> (i32, i32, i32) {
    %c0_i32 = arith.constant 0 : i32
    %c0_i32_0 = arith.constant 0 : i32
    %c0_i32_1 = arith.constant 0 : i32
    return %arg0, %c0_i32, %c0_i32_0 : i32, i32, i32
  }
  func.func @transform_1(%arg0: i32) -> (i32, i32, i32) {
    %c0_i32 = arith.constant 0 : i32
    %c0_i32_0 = arith.constant 0 : i32
    %c0_i32_1 = arith.constant 0 : i32
    return %arg0, %c0_i32, %c0_i32_0 : i32, i32, i32
  }
}

</mosaic_0001>

<llo_original>
// kernel: tpu_custom_call.1
$region0: #{tpu_custom_call.1}
  #allocation0 [shape = 'u32[]', space=smem, size = 0x4, offset = 0x4, fixed_abs, tag = 'smem constant byte address 0x4 - core index']
  #allocation1 [shape = 'u32[144,128]{1,0:T(1,128)}', space=vmem, size = 0x12000, scoped, tag = 'internal scratch']
  %s0 = inlined_call_operand.hbm [shape: f32[8,16,16], index: 0, kind: input, shape index: {}]
  %s1 = inlined_call_operand.vmem [shape: f32[8,18,18], index: 1, kind: output, shape index: {}]
  %s2 = sld [smem:[#allocation0]]
  $region41: #{tpu_custom_call.1} parent=0
    _
  %s4 = ssub.s32 1, %s2
  %s5 = scalar_select 0, %s4, %s2
  $region1: #{tpu_custom_call.1} parent=0
    #allocation2 [shape = 'u8[65536]{0}', space=vmem, size = 0x10000, scoped, tag = 'input window, operand 0']
    #allocation3 [shape = 's32[2]{0}', space=sflag, size = 0x8, scoped, tag = 'scoped memory for tpu_custom_call.1']
    %6 = vsyncpa [#allocation3], 0
    %s7 = scalar_lea.sflag [#allocation3], 1
    %8 = vsyncpa %s7, 0
    loop: start=0, step=1, limit=4
    $region2: #{tpu_custom_call.1} parent=1 // loop_pre_header
      _
    $region3: #{tpu_custom_call.1} parent=1 // loop_header
      %s10 = sphi 0, %s14
      %p11 = scmp.ge.s32.totalorder %s10, 4
      %s20 = sphi 0, %s22
      %s23 = sphi 0, %s20
      %s24 = sphi 0, %s23
      %s40 = sphi 0, %s24
      %s46 = sphi 0, %s48
      %s49 = sphi 0, %s46
      %s50 = sphi 0, %s49
      %s66 = sphi 0, %s50
    $region4: #{tpu_custom_call.1} parent=1 // loop_header_branch
      %13 = sbr.rel (%p11) target = $region8
    $region5: #{tpu_custom_call.1} parent=1 // loop_body
      %s15 = ssub.s32 %s10, 1
      %s16 = ssub.s32 %s10, 2
      %s17 = sadd.s32 %s10, 1
      %s18 = ssub.s32 %s10, %s17
      %p19 = scmp.eq.s32.totalorder %s18, 0
      %s21 = sadd.s32 %s20, 1
      %s22 = scalar_select %p19, %s20, %s21
      %p25 = pneg %p19
      %p26 = scmp.eq.s32.totalorder %s10, 1
      %p27 = por %p25, %p26
      %p28 = scmp.ne.s32.totalorder %s20, %s23
      %p29 = scmp.eq.s32.totalorder %s10, 0
      %p30 = por %p28, %p29
      %p31 = scmp.ne.s32.totalorder %s20, %s23
      %p32 = scmp.eq.s32.totalorder %s15, 1
      %p33 = por %p31, %p32
      %p34 = scmp.ne.s32.totalorder %s23, %s24
      %p35 = scmp.eq.s32.totalorder %s15, 0
      %p36 = por %p34, %p35
      %p37 = scmp.ne.s32.totalorder %s23, %s24
      %p38 = scmp.eq.s32.totalorder %s16, 1
      %p39 = por %p37, %p38
      %p41 = scmp.ne.s32.totalorder %s24, %s40
      %p42 = scmp.eq.s32.totalorder %s16, 0
      %p43 = por %p41, %p42
      %s44 = ssub.s32 %s10, %s17
      %p45 = scmp.eq.s32.totalorder %s44, 0
      %s47 = sadd.s32 %s46, 1
      %s48 = scalar_select %p45, %s46, %s47
      %p51 = pneg %p45
      %p52 = scmp.eq.s32.totalorder %s10, 1
      %p53 = por %p51, %p52
      %p54 = scmp.ne.s32.totalorder %s46, %s49
      %p55 = scmp.eq.s32.totalorder %s10, 0
      %p56 = por %p54, %p55
      %p57 = scmp.ne.s32.totalorder %s46, %s49
      %p58 = scmp.eq.s32.totalorder %s15, 1
      %p59 = por %p57, %p58
      %p60 = scmp.ne.s32.totalorder %s49, %s50
      %p61 = scmp.eq.s32.totalorder %s15, 0
      %p62 = por %p60, %p61
      %p63 = scmp.ne.s32.totalorder %s49, %s50
      %p64 = scmp.eq.s32.totalorder %s16, 1
      %p65 = por %p63, %p64
      %p67 = scmp.ne.s32.totalorder %s50, %s66
      %p68 = scmp.eq.s32.totalorder %s16, 0
      %p69 = por %p67, %p68
      %p70 = scmp.le.s32.totalorder 1, %s10
      %p71 = scmp.lt.s32.totalorder %s10, 3
      %p72 = pnand %p70, %p71
      %p73 = pneg %p72
      // Predicated region
      $region9: #{tpu_custom_call.1} parent=5 // pred_check
        _
      $region10: #{tpu_custom_call.1} parent=5 // pred_check_branch
        %75 = sbr.rel (%p72) target = $region12
      $region11: #{tpu_custom_call.1} parent=5 // pred_region
        %s76 = ssub.s32 %s10, 1
      $region12: #{tpu_custom_call.1} parent=5 // pred_fallthru
        _
      %p77 = scmp.lt.s32.totalorder %s10, 2
      // Predicated region
      $region13: #{tpu_custom_call.1} parent=5 // pred_check
        %p78 = pneg %p77
      $region14: #{tpu_custom_call.1} parent=5 // pred_check_branch
        %80 = sbr.rel (%p78) target = $region16
      $region15: #{tpu_custom_call.1} parent=5 // pred_region
        // Predicated region
        $region17: #{tpu_custom_call.1} parent=15 // pred_check
          %p81 = pneg %p30
        $region18: #{tpu_custom_call.1} parent=15 // pred_check_branch
          %83 = sbr.rel (%p81) target = $region20
        $region19: #{tpu_custom_call.1} parent=15 // pred_region
          %s84 = sand.u32 %s20, 1
          %s85 = scalar_lea.sflag [#allocation3], %s84
          %s86 = sand.u32 %s20, 1
          %s87 = smul.addr %s86, 64
          %s88 = scalar_lea.vmem [#allocation2], %s87
          %s89 = smul.u32 4, %s10
          %s91 = ssub.s32 1024, 1024
          %92 = vsyncadd %s85, %s91
          %s93 = smul.addr %s89, 2
          %s94 = smul.addr %s93, 128
          %s95 = scalar_lea.hbm %s0, %s94
          %s96 = sshll.u32 %s88, 4
          %s97 = int_to_ptr.vmem [resolvable:$true] %s96
          %102 = dma.hbm_to_vmem [thread:$0]  %s95, 1024, %s97, %s85, 128, 128, 8
        $region20: #{tpu_custom_call.1} parent=15 // pred_fallthru
          _
      $region16: #{tpu_custom_call.1} parent=5 // pred_fallthru
        _
      %p103 = scmp.le.s32.totalorder 1, %s10
      %p104 = scmp.lt.s32.totalorder %s10, 3
      %p105 = pnand %p103, %p104
      %p106 = pneg %p105
      // Predicated region
      $region21: #{tpu_custom_call.1} parent=5 // pred_check
        _
      $region22: #{tpu_custom_call.1} parent=5 // pred_check_branch
        %108 = sbr.rel (%p105) target = $region24
      $region23: #{tpu_custom_call.1} parent=5 // pred_region
        %s109 = ssub.s32 %s10, 1
        %s110 = sand.u32 %s23, 1
        %s111 = scalar_lea.sflag [#allocation3], %s110
        %s112 = sand.u32 %s23, 1
        %s113 = smul.addr %s112, 64
        %s114 = scalar_lea.vmem [#allocation2], %s113
        // Predicated region
        $region25: #{tpu_custom_call.1} parent=23 // pred_check
          %p115 = pneg %p36
        $region26: #{tpu_custom_call.1} parent=23 // pred_check_branch
          %117 = sbr.rel (%p115) target = $region28
        $region27: #{tpu_custom_call.1} parent=23 // pred_region
          %118 = dma.done %s111, 1024
        $region28: #{tpu_custom_call.1} parent=23 // pred_fallthru
          _
        %s119 = sand.u32 %s23, 1
        %s120 = scalar_lea.sflag [#allocation3], %s119
        %s121 = sand.u32 %s23, 1
        %s122 = smul.addr %s121, 64
        %s123 = scalar_lea.vmem [#allocation2], %s122
        %p124 = pneg %p36
        %p125 = pneg %p33
        %p126 = pneg %p62
        %p127 = pneg %p59
        %s128 = smul.u32 4, %s15
        %p129 = scmp.lt.s32.totalorder %s128, 7
        %s130 = scalar_select %p129, %s128, 7
        %s131 = smul.addr %s130, 3
        %s132 = smul.addr %s131, 8
        %s133 = scalar_lea.vmem %s1, %s132
        %s134 = smul.u32 4, %s15
        %s135 = smul.u32 4, %s15
        %p136 = scmp.lt.s32.totalorder %s135, 7
        %s137 = scalar_select %p136, %s135, 7
        %s138 = smul.addr %s137, 3
        %s139 = smul.addr %s138, 8
        %s140 = scalar_lea.vmem %s1, %s139
        %s141 = smul.u32 4, %s15
        %v142 = vld [vmem:[%s114] sm:$0x1]
        %v143 = vld [vmem:[%s114 + $0x10] sm:$0x1]
        %v144 = vld [vmem:[%s114 + $0x20] sm:$0x1]
        %v145 = vld [vmem:[%s114 + $0x30] sm:$0x1]
        %150 = vrot.lane.b32.xlu0 %v142, 1
        %v151 = vpop.permute.xlu0 %150
        %152 = vrot.lane.b32.xlu0 %v143, 1
        %v153 = vpop.permute.xlu0 %152
        %154 = vrot.lane.b32.xlu0 %v144, 1
        %v155 = vpop.permute.xlu0 %154
        %156 = vrot.lane.b32.xlu0 %v145, 1
        %v157 = vpop.permute.xlu0 %156
        %vm162 = vcmask 131080
        %163 = vst.msk [vmem:[%s140] sm:$0x1] %vm162, %v151
        %164 = vst.msk [vmem:[%s140 + $0x18] sm:$0x1] %vm162, %v153
        %165 = vst.msk [vmem:[%s140 + $0x30] sm:$0x1] %vm162, %v155
        %166 = vst.msk [vmem:[%s140 + $0x48] sm:$0x1] %vm162, %v157
        %v167 = vld [vmem:[%s114] sm:$0xff]
        %v168 = vld [vmem:[%s114 + $0x8] sm:$0xff]
        %v169 = vld [vmem:[%s114 + $0x10] sm:$0xff]
        %v170 = vld [vmem:[%s114 + $0x18] sm:$0xff]
        %v171 = vld [vmem:[%s114 + $0x20] sm:$0xff]
        %v172 = vld [vmem:[%s114 + $0x28] sm:$0xff]
        %v173 = vld [vmem:[%s114 + $0x30] sm:$0xff]
        %v174 = vld [vmem:[%s114 + $0x38] sm:$0xff]
        %183 = vrot.lane.b32.xlu0 %v167, 1
        %v184 = vpop.permute.xlu0 %183
        %185 = vrot.lane.b32.xlu0 %v168, 1
        %v186 = vpop.permute.xlu0 %185
        %187 = vrot.lane.b32.xlu0 %v169, 1
        %v188 = vpop.permute.xlu0 %187
        %189 = vrot.lane.b32.xlu0 %v170, 1
        %v190 = vpop.permute.xlu0 %189
        %191 = vrot.lane.b32.xlu0 %v171, 1
        %v192 = vpop.permute.xlu0 %191
        %193 = vrot.lane.b32.xlu0 %v172, 1
        %v194 = vpop.permute.xlu0 %193
        %195 = vrot.lane.b32.xlu0 %v173, 1
        %v196 = vpop.permute.xlu0 %195
        %197 = vrot.lane.b32.xlu0 %v174, 1
        %v198 = vpop.permute.xlu0 %197
        %vm207 = vcmask 138248
        %208 = vst.msk [vmem:[%s140 + $0x1] sm:$0xff] %vm207, %v184
        %209 = vst.msk [vmem:[%s140 + $0x9] sm:$0xff] %vm207, %v186
        %210 = vst.msk [vmem:[%s140 + $0x19] sm:$0xff] %vm207, %v188
        %211 = vst.msk [vmem:[%s140 + $0x21] sm:$0xff] %vm207, %v190
        %212 = vst.msk [vmem:[%s140 + $0x31] sm:$0xff] %vm207, %v192
        %213 = vst.msk [vmem:[%s140 + $0x39] sm:$0xff] %vm207, %v194
        %214 = vst.msk [vmem:[%s140 + $0x49] sm:$0xff] %vm207, %v196
        %215 = vst.msk [vmem:[%s140 + $0x51] sm:$0xff] %vm207, %v198
        %v216 = vld [vmem:[%s114 + $0xf] sm:$0x1]
        %v217 = vld [vmem:[%s114 + $0x1f] sm:$0x1]
        %v218 = vld [vmem:[%s114 + $0x2f] sm:$0x1]
        %v219 = vld [vmem:[%s114 + $0x3f] sm:$0x1]
        %224 = vrot.lane.b32.xlu0 %v216, 1
        %v225 = vpop.permute.xlu0 %224
        %226 = vrot.lane.b32.xlu0 %v217, 1
        %v227 = vpop.permute.xlu0 %226
        %228 = vrot.lane.b32.xlu0 %v218, 1
        %v229 = vpop.permute.xlu0 %228
        %230 = vrot.lane.b32.xlu0 %v219, 1
        %v231 = vpop.permute.xlu0 %230
        %236 = vst.msk [vmem:[%s140 + $0x11] sm:$0x1] %vm162, %v225
        %237 = vst.msk [vmem:[%s140 + $0x29] sm:$0x1] %vm162, %v227
        %238 = vst.msk [vmem:[%s140 + $0x41] sm:$0x1] %vm162, %v229
        %239 = vst.msk [vmem:[%s140 + $0x59] sm:$0x1] %vm162, %v231
        %v240 = vld [vmem:[%s140] sm:$0xff]
        %v241 = vld [vmem:[%s140 + $0x8] sm:$0xff]
        %v242 = vld [vmem:[%s140 + $0x10] sm:$0x3]
        %v243 = vld [vmem:[%s140 + $0x18] sm:$0xff]
        %v244 = vld [vmem:[%s140 + $0x20] sm:$0xff]
        %v245 = vld [vmem:[%s140 + $0x28] sm:$0x3]
        %v246 = vld [vmem:[%s140 + $0x30] sm:$0xff]
        %v247 = vld [vmem:[%s140 + $0x38] sm:$0xff]
        %v248 = vld [vmem:[%s140 + $0x40] sm:$0x3]
        %v249 = vld [vmem:[%s140 + $0x48] sm:$0xff]
        %v250 = vld [vmem:[%s140 + $0x50] sm:$0xff]
        %v251 = vld [vmem:[%s140 + $0x58] sm:$0x3]
        %264 = vrot.lane.b32.xlu0 %v240, 127
        %v265 = vpop.permute.xlu0 %264
        %266 = vrot.lane.b32.xlu0 %v241, 127
        %v267 = vpop.permute.xlu0 %266
        %268 = vrot.lane.b32.xlu0 %v242, 127
        %v269 = vpop.permute.xlu0 %268
        %270 = vrot.lane.b32.xlu0 %v243, 127
        %v271 = vpop.permute.xlu0 %270
        %272 = vrot.lane.b32.xlu0 %v244, 127
        %v273 = vpop.permute.xlu0 %272
        %274 = vrot.lane.b32.xlu0 %v245, 127
        %v275 = vpop.permute.xlu0 %274
        %276 = vrot.lane.b32.xlu0 %v246, 127
        %v277 = vpop.permute.xlu0 %276
        %278 = vrot.lane.b32.xlu0 %v247, 127
        %v279 = vpop.permute.xlu0 %278
        %280 = vrot.lane.b32.xlu0 %v248, 127
        %v281 = vpop.permute.xlu0 %280
        %282 = vrot.lane.b32.xlu0 %v249, 127
        %v283 = vpop.permute.xlu0 %282
        %284 = vrot.lane.b32.xlu0 %v250, 127
        %v285 = vpop.permute.xlu0 %284
        %286 = vrot.lane.b32.xlu0 %v251, 127
        %v287 = vpop.permute.xlu0 %286
        %vm300 = vcmask 7168
        %301 = vst.msk [vmem:[%s140] sm:$0xff] %vm300, %v265
        %302 = vst.msk [vmem:[%s140 + $0x8] sm:$0xff] %vm300, %v267
        %vm303 = vcmask 1024
        %304 = vst.msk [vmem:[%s140 + $0x10] sm:$0x3] %vm303, %v269
        %305 = vst.msk [vmem:[%s140 + $0x18] sm:$0xff] %vm300, %v271
        %306 = vst.msk [vmem:[%s140 + $0x20] sm:$0xff] %vm300, %v273
        %307 = vst.msk [vmem:[%s140 + $0x28] sm:$0x3] %vm303, %v275
        %308 = vst.msk [vmem:[%s140 + $0x30] sm:$0xff] %vm300, %v277
        %309 = vst.msk [vmem:[%s140 + $0x38] sm:$0xff] %vm300, %v279
        %310 = vst.msk [vmem:[%s140 + $0x40] sm:$0x3] %vm303, %v281
        %311 = vst.msk [vmem:[%s140 + $0x48] sm:$0xff] %vm300, %v283
        %312 = vst.msk [vmem:[%s140 + $0x50] sm:$0xff] %vm300, %v285
        %313 = vst.msk [vmem:[%s140 + $0x58] sm:$0x3] %vm303, %v287
        %v314 = vld [vmem:[%s140] sm:$0xff]
        %v315 = vld [vmem:[%s140 + $0x8] sm:$0xff]
        %v316 = vld [vmem:[%s140 + $0x10] sm:$0x3]
        %v317 = vld [vmem:[%s140 + $0x18] sm:$0xff]
        %v318 = vld [vmem:[%s140 + $0x20] sm:$0xff]
        %v319 = vld [vmem:[%s140 + $0x28] sm:$0x3]
        %v320 = vld [vmem:[%s140 + $0x30] sm:$0xff]
        %v321 = vld [vmem:[%s140 + $0x38] sm:$0xff]
        %v322 = vld [vmem:[%s140 + $0x40] sm:$0x3]
        %v323 = vld [vmem:[%s140 + $0x48] sm:$0xff]
        %v324 = vld [vmem:[%s140 + $0x50] sm:$0xff]
        %v325 = vld [vmem:[%s140 + $0x58] sm:$0x3]
        %338 = vrot.lane.b32.xlu0 %v314, 1
        %v339 = vpop.permute.xlu0 %338
        %340 = vrot.lane.b32.xlu0 %v315, 1
        %v341 = vpop.permute.xlu0 %340
        %342 = vrot.lane.b32.xlu0 %v316, 1
        %v343 = vpop.permute.xlu0 %342
        %344 = vrot.lane.b32.xlu0 %v317, 1
        %v345 = vpop.permute.xlu0 %344
        %346 = vrot.lane.b32.xlu0 %v318, 1
        %v347 = vpop.permute.xlu0 %346
        %348 = vrot.lane.b32.xlu0 %v319, 1
        %v349 = vpop.permute.xlu0 %348
        %350 = vrot.lane.b32.xlu0 %v320, 1
        %v351 = vpop.permute.xlu0 %350
        %352 = vrot.lane.b32.xlu0 %v321, 1
        %v353 = vpop.permute.xlu0 %352
        %354 = vrot.lane.b32.xlu0 %v322, 1
        %v355 = vpop.permute.xlu0 %354
        %356 = vrot.lane.b32.xlu0 %v323, 1
        %v357 = vpop.permute.xlu0 %356
        %358 = vrot.lane.b32.xlu0 %v324, 1
        %v359 = vpop.permute.xlu0 %358
        %360 = vrot.lane.b32.xlu0 %v325, 1
        %v361 = vpop.permute.xlu0 %360
        %vm374 = vcmask 146568
        %375 = vst.msk [vmem:[%s140] sm:$0xff] %vm374, %v339
        %376 = vst.msk [vmem:[%s140 + $0x8] sm:$0xff] %vm374, %v341
        %vm377 = vcmask 140424
        %378 = vst.msk [vmem:[%s140 + $0x10] sm:$0x3] %vm377, %v343
        %379 = vst.msk [vmem:[%s140 + $0x18] sm:$0xff] %vm374, %v345
        %380 = vst.msk [vmem:[%s140 + $0x20] sm:$0xff] %vm374, %v347
        %381 = vst.msk [vmem:[%s140 + $0x28] sm:$0x3] %vm377, %v349
        %382 = vst.msk [vmem:[%s140 + $0x30] sm:$0xff] %vm374, %v351
        %383 = vst.msk [vmem:[%s140 + $0x38] sm:$0xff] %vm374, %v353
        %384 = vst.msk [vmem:[%s140 + $0x40] sm:$0x3] %vm377, %v355
        %385 = vst.msk [vmem:[%s140 + $0x48] sm:$0xff] %vm374, %v357
        %386 = vst.msk [vmem:[%s140 + $0x50] sm:$0xff] %vm374, %v359
        %387 = vst.msk [vmem:[%s140 + $0x58] sm:$0x3] %vm377, %v361
        %s388 = smul.u32 4, %s15
        %p389 = scmp.lt.s32.totalorder %s388, 7
        %s390 = scalar_select %p389, %s388, 7
        %s391 = smul.addr %s390, 3
        %s392 = smul.addr %s391, 8
        %s393 = scalar_lea.vmem %s1, %s392
        // Predicated region
        $region29: #{tpu_custom_call.1} parent=23 // pred_check
          %p394 = pneg %p59
        $region30: #{tpu_custom_call.1} parent=23 // pred_check_branch
          %396 = sbr.rel (%p394) target = $region32
        $region31: #{tpu_custom_call.1} parent=23 // pred_region
          %s397 = smul.u32 4, %s15
        $region32: #{tpu_custom_call.1} parent=23 // pred_fallthru
          _
      $region24: #{tpu_custom_call.1} parent=5 // pred_fallthru
        _
      %p398 = scmp.le.s32.totalorder 2, %s10
      // Predicated region
      $region33: #{tpu_custom_call.1} parent=5 // pred_check
        %p399 = pneg %p398
      $region34: #{tpu_custom_call.1} parent=5 // pred_check_branch
        %401 = sbr.rel (%p399) target = $region36
      $region35: #{tpu_custom_call.1} parent=5 // pred_region
        %s402 = ssub.s32 %s10, 2
        // Predicated region
        $region37: #{tpu_custom_call.1} parent=35 // pred_check
          %p403 = pneg %p65
        $region38: #{tpu_custom_call.1} parent=35 // pred_check_branch
          %405 = sbr.rel (%p403) target = $region40
        $region39: #{tpu_custom_call.1} parent=35 // pred_region
          %s406 = smul.u32 4, %s16
          %p407 = scmp.lt.s32.totalorder %s406, 7
          %s408 = scalar_select %p407, %s406, 7
          %s409 = smul.addr %s408, 3
          %s410 = smul.addr %s409, 8
          %s411 = scalar_lea.vmem %s1, %s410
        $region40: #{tpu_custom_call.1} parent=35 // pred_fallthru
          _
      $region36: #{tpu_custom_call.1} parent=5 // pred_fallthru
        _
    $region6: #{tpu_custom_call.1} parent=1 // loop_footer
      %s14 = sadd.s32 1, %s10
    $region7: #{tpu_custom_call.1} parent=1 // loop_footer_branch
      %9 = sbr.rel target = $region3
    $region8: #{tpu_custom_call.1} parent=1 // loop_exit
      _
    %412 = vsyncpa [#allocation3], 1
    %s413 = scalar_lea.sflag [#allocation3], 1
    %414 = vsyncpa %s413, 1

</llo_original>
